<compile_context>
chip_gen: v5e
topology: v5e:2x2
jax: 0.10.0
libtpu: 0.0.40
codegen_flags: <defaults>
</compile_context>

<pallas_src>
import functools
import math

import jax
import jax.numpy as jnp
from jax.experimental import pallas as pl
from jax.experimental.pallas import tpu as pltpu

_LANE = 128
_SUBLANE = 8


def _round_up(n: int, m: int) -> int:
    return ((n + m - 1) // m) * m


def _vmem_spec():
    return pl.BlockSpec(memory_space=pltpu.MemorySpace.VMEM)


# ---------------------------------------------------------------------------
# Fused kernel
# ---------------------------------------------------------------------------
def _dot_f32acc(a, b):
    # Weights arrive already in their MXU dtype (bf16 on the fast path), so the
    # only in-kernel cast is the activation operand; accumulate in f32.
    return jnp.dot(a.astype(b.dtype), b, preferred_element_type=jnp.float32)


def _bn_relu(h, gamma, beta, *, eps, inv_n):
    # PyTorch training-mode BatchNorm1d: batch mean, biased batch variance.
    # Single-pass stats (E[x], E[x^2]); affine folded into scale/shift so the
    # per-element work is one mul + one add (+ ReLU max).  rsqrt -> EUP slot,
    # cross-sublane reductions -> XLU slot.
    mean = jnp.sum(h, axis=0, keepdims=True) * inv_n
    var = jnp.sum(h * h, axis=0, keepdims=True) * inv_n - mean * mean
    var = jnp.maximum(var, 0.0)  # guard tiny negatives from cancellation
    scale = gamma * jax.lax.rsqrt(var + eps)
    shift = beta - mean * scale
    return jnp.maximum(h * scale + shift, 0.0)


def _classifier_kernel(x_ref,
                       w1_ref, b1_ref, g1_ref, be1_ref,
                       w2_ref, b2_ref, g2_ref, be2_ref,
                       w3_ref, b3_ref,
                       o_ref, *, eps):
    inv_n = 1.0 / x_ref.shape[0]  # true batch; the batch axis is never padded

    # Linear -> BN -> ReLU
    h = _dot_f32acc(x_ref[...], w1_ref[...]) + b1_ref[...]
    h = _bn_relu(h, g1_ref[...], be1_ref[...], eps=eps, inv_n=inv_n)

    # Linear -> BN -> ReLU
    h = _dot_f32acc(h, w2_ref[...]) + b2_ref[...]
    h = _bn_relu(h, g2_ref[...], be2_ref[...], eps=eps, inv_n=inv_n)

    # Final Linear (lane-dense padded logits, unmasked store)
    o_ref[...] = (_dot_f32acc(h, w3_ref[...]) + b3_ref[...]).astype(o_ref.dtype)


# ---------------------------------------------------------------------------
# One-time parameter preparation: pad lane-dense + cast matmul weights.
# Call ONCE (outside the forward); the result is reused by every forward call.
# Zero padding is mathematically inert (zero weight rows/cols, zero bias/
# gamma/beta -> padded features stay exactly 0 through BN/ReLU).
# ---------------------------------------------------------------------------
def prepare_classifier_params(params, mxu_dtype=jnp.bfloat16):
    in_features, hidden = params["fc1"][0].shape
    num_classes = params["fc3"][0].shape[1]

    fin_k = _round_up(in_features, _SUBLANE)  # tiny K pad only (no 128 pad)
    hid_p = _round_up(hidden, _LANE)
    cls_p = _round_up(num_classes, _LANE)
    wdt = jnp.float32 if mxu_dtype is None else mxu_dtype

    def pad2(a, rows, cols, dt):
        return jnp.pad(a, ((0, rows - a.shape[0]), (0, cols - a.shape[1]))).astype(dt)

    def padv(v, n):
        return jnp.pad(v, (0, n - v.shape[0])).reshape(1, n).astype(jnp.float32)

    return {
        "w1": pad2(params["fc1"][0], fin_k, hid_p, wdt),
        "b1": padv(params["fc1"][1], hid_p),
        "g1": padv(params["bn1"][0], hid_p),
        "be1": padv(params["bn1"][1], hid_p),
        "w2": pad2(params["fc2"][0], hid_p, hid_p, wdt),
        "b2": padv(params["fc2"][1], hid_p),
        "g2": padv(params["bn2"][0], hid_p),
        "be2": padv(params["bn2"][1], hid_p),
        "w3": pad2(params["fc3"][0], hid_p, cls_p, wdt),
        "b3": padv(params["fc3"][1], cls_p),
    }


# ---------------------------------------------------------------------------
# Forward wrapper: one fused, grid-less pallas_call; slice logits back.
# ---------------------------------------------------------------------------
@functools.partial(jax.jit, static_argnames=("num_classes", "eps"))
def classifier_forward(prepared, x, *, num_classes, eps=1e-5):
    batch = x.shape[0]
    fin_k = prepared["w1"].shape[0]
    hid_p = prepared["w1"].shape[1]
    cls_p = prepared["b3"].shape[1]

    x = x.astype(jnp.float32)
    if x.shape[1] != fin_k:
        # Sublane-granularity pad only (in_features -> next multiple of 8);
        # no-op for in_features % 8 == 0.  The old 4x lane pad is gone.
        x = jnp.pad(x, ((0, 0), (0, fin_k - x.shape[1])))

    # Everything is VMEM-resident for the whole grid-less call.  Rough budget
    # (inputs + output + two BxH f32 intermediates + params) with generous
    # compiler-scratch headroom, capped well under v7x's 64 MiB physical VMEM.
    resident = (x.size * 4 + batch * cls_p * 4 + 2 * batch * hid_p * 4
                + sum(v.size * v.dtype.itemsize for v in prepared.values()))
    vmem_limit = int(min(max(4 * resident + (8 << 20), 16 << 20), 48 << 20))

    out_padded = pl.pallas_call(
        functools.partial(_classifier_kernel, eps=eps),
        out_shape=jax.ShapeDtypeStruct((batch, cls_p), jnp.float32),
        in_specs=[_vmem_spec()] * 11,
        out_specs=_vmem_spec(),
        compiler_params=pltpu.CompilerParams(vmem_limit_bytes=vmem_limit),
    )(x,
      prepared["w1"], prepared["b1"], prepared["g1"], prepared["be1"],
      prepared["w2"], prepared["b2"], prepared["g2"], prepared["be2"],
      prepared["w3"], prepared["b3"])

    return out_padded[:, :num_classes]


# ---------------------------------------------------------------------------
# Parameter construction (PyTorch-style U(-1/sqrt(fan_in), 1/sqrt(fan_in))).
# Linear weights stored as [in_features, out_features] -> y = x @ W + b.
# ---------------------------------------------------------------------------
def _init_linear(key, fan_in, fan_out):
    kw, kb = jax.random.split(key)
    bound = 1.0 / math.sqrt(fan_in)
    w = jax.random.uniform(kw, (fan_in, fan_out), jnp.float32, -bound, bound)
    b = jax.random.uniform(kb, (fan_out,), jnp.float32, -bound, bound)
    return w, b


def init_classifier_params(key, in_features, hidden_features, num_classes):
    k1, k2, k3 = jax.random.split(key, 3)
    ones = jnp.ones((hidden_features,), jnp.float32)
    zeros = jnp.zeros((hidden_features,), jnp.float32)
    return {
        "fc1": _init_linear(k1, in_features, hidden_features),
        "bn1": (ones, zeros),
        "fc2": _init_linear(k2, hidden_features, hidden_features),
        "bn2": (ones, zeros),
        "fc3": _init_linear(k3, hidden_features, num_classes),
    }


# ---------------------------------------------------------------------------
# Pure-JAX reference (mirrors the kernel math; optional bf16 matmul operands).
# ---------------------------------------------------------------------------
def _reference_forward(params, x, eps=1e-5, mxu_dtype=None):
    def mm(a, b):
        if mxu_dtype is not None:
            a = a.astype(mxu_dtype)
            b = b.astype(mxu_dtype)
        return jnp.dot(a, b, preferred_element_type=jnp.float32)

    def bn_relu(h, g, b):
        mean = jnp.mean(h, axis=0, keepdims=True)
        var = jnp.maximum(jnp.mean(h * h, axis=0, keepdims=True) - mean * mean, 0.0)
        return jnp.maximum((h - mean) * jax.lax.rsqrt(var + eps) * g + b, 0.0)

    h = mm(x, params["fc1"][0]) + params["fc1"][1]
    h = bn_relu(h, *params["bn1"])
    h = mm(h, params["fc2"][0]) + params["fc2"][1]
    h = bn_relu(h, *params["bn2"])
    return mm(h, params["fc3"][0]) + params["fc3"][1]


if __name__ == "__main__":
    # Small shapes consistent with Classifier(in_features, hidden, num_classes).
    batch = 8
    in_features = 32
    hidden_features = 128
    num_classes = 10

    root = jax.random.PRNGKey(0)
    k_params, k_x = jax.random.split(root)

    params = init_classifier_params(k_params, in_features, hidden_features,
                                    num_classes)
    x = jax.random.normal(k_x, (batch, in_features), jnp.float32)

    # 1) Tight correctness check of the kernel structure with f32 MXU operands.
    prep_f32 = prepare_classifier_params(params, mxu_dtype=None)
    y_f32 = jax.block_until_ready(
        classifier_forward(prep_f32, x, num_classes=num_classes))
    ref_f32 = _reference_forward(params, x)
    assert y_f32.shape == (batch, num_classes)
    assert bool(jnp.allclose(y_f32, ref_f32, rtol=1e-3, atol=1e-3))

    # 2) Default fast path: bf16 MXU operands (f32 accumulate), bf16 weight DMA.
    prep_bf16 = prepare_classifier_params(params)  # mxu_dtype=bf16 by default
    logits = jax.block_until_ready(
        classifier_forward(prep_bf16, x, num_classes=num_classes))
    ref_bf16 = _reference_forward(params, x, mxu_dtype=jnp.bfloat16)
    assert logits.shape == (batch, num_classes)
    assert bool(jnp.all(jnp.isfinite(logits)))
    assert bool(jnp.allclose(logits, ref_bf16, rtol=2e-2, atol=2e-2))

    print("KERNEL_OK")
</pallas_src>

<mosaic_0001>
module attributes {stable_mosaic.version = 11 : i64} {
  func.func @_classifier_kernel(%arg0: memref<8x32xf32, #tpu.memory_space<vmem>>, %arg1: memref<32x128xf32, #tpu.memory_space<vmem>>, %arg2: memref<1x128xf32, #tpu.memory_space<vmem>>, %arg3: memref<1x128xf32, #tpu.memory_space<vmem>>, %arg4: memref<1x128xf32, #tpu.memory_space<vmem>>, %arg5: memref<128x128xf32, #tpu.memory_space<vmem>>, %arg6: memref<1x128xf32, #tpu.memory_space<vmem>>, %arg7: memref<1x128xf32, #tpu.memory_space<vmem>>, %arg8: memref<1x128xf32, #tpu.memory_space<vmem>>, %arg9: memref<128x128xf32, #tpu.memory_space<vmem>>, %arg10: memref<1x128xf32, #tpu.memory_space<vmem>>, %arg11: memref<8x128xf32, #tpu.memory_space<vmem>>) attributes {dimension_semantics = [], scalar_prefetch = 0 : i64, scratch_operands = 0 : i64, tpu.core_type = #tpu.core_type<tc>} {
    %c0 = arith.constant 0 : index
    %c0_0 = arith.constant 0 : index
    %0 = vector.load %arg0[%c0, %c0_0] : memref<8x32xf32, #tpu.memory_space<vmem>>, vector<8x32xf32>
    %c0_1 = arith.constant 0 : index
    %c0_2 = arith.constant 0 : index
    %1 = vector.load %arg1[%c0_1, %c0_2] : memref<32x128xf32, #tpu.memory_space<vmem>>, vector<32x128xf32>
    %cst = arith.constant dense<0.000000e+00> : vector<8x128xf32>
    %2 = tpu.matmul %0, %1, %cst {dimension_numbers = #tpu.dot_dimension_numbers<[1], [0], [0], [1], [0, 0, 1, 1], [], []>} : vector<8x32xf32>, vector<32x128xf32>, vector<8x128xf32> -> vector<8x128xf32>
    %c0_3 = arith.constant 0 : index
    %c0_4 = arith.constant 0 : index
    %3 = vector.load %arg2[%c0_3, %c0_4] : memref<1x128xf32, #tpu.memory_space<vmem>>, vector<1x128xf32>
    %4 = vector.broadcast %3 : vector<1x128xf32> to vector<8x128xf32>
    %5 = arith.addf %2, %4 : vector<8x128xf32>
    %c0_5 = arith.constant 0 : index
    %c0_6 = arith.constant 0 : index
    %6 = vector.load %arg3[%c0_5, %c0_6] : memref<1x128xf32, #tpu.memory_space<vmem>>, vector<1x128xf32>
    %c0_7 = arith.constant 0 : index
    %c0_8 = arith.constant 0 : index
    %7 = vector.load %arg4[%c0_7, %c0_8] : memref<1x128xf32, #tpu.memory_space<vmem>>, vector<1x128xf32>
    %cst_9 = arith.constant dense<0.000000e+00> : vector<128xf32>
    %8 = vector.multi_reduction <add>, %5, %cst_9 [0] : vector<8x128xf32> to vector<128xf32>
    %9 = vector.shape_cast %8 : vector<128xf32> to vector<1x128xf32>
    %cst_10 = arith.constant 1.250000e-01 : f32
    %10 = vector.broadcast %cst_10 : f32 to vector<1x128xf32>
    %11 = arith.mulf %9, %10 : vector<1x128xf32>
    %12 = arith.mulf %5, %5 : vector<8x128xf32>
    %cst_11 = arith.constant dense<0.000000e+00> : vector<128xf32>
    %13 = vector.multi_reduction <add>, %12, %cst_11 [0] : vector<8x128xf32> to vector<128xf32>
    %14 = vector.shape_cast %13 : vector<128xf32> to vector<1x128xf32>
    %cst_12 = arith.constant 1.250000e-01 : f32
    %15 = vector.broadcast %cst_12 : f32 to vector<1x128xf32>
    %16 = arith.mulf %14, %15 : vector<1x128xf32>
    %17 = arith.mulf %11, %11 : vector<1x128xf32>
    %18 = arith.subf %16, %17 : vector<1x128xf32>
    %cst_13 = arith.constant 0.000000e+00 : f32
    %19 = vector.broadcast %cst_13 : f32 to vector<1x128xf32>
    %20 = arith.maximumf %18, %19 : vector<1x128xf32>
    %cst_14 = arith.constant 9.99999974E-6 : f32
    %21 = vector.broadcast %cst_14 : f32 to vector<1x128xf32>
    %22 = arith.addf %20, %21 : vector<1x128xf32>
    %23 = math.rsqrt %22 : vector<1x128xf32>
    %24 = arith.mulf %6, %23 : vector<1x128xf32>
    %25 = arith.mulf %11, %24 : vector<1x128xf32>
    %26 = arith.subf %7, %25 : vector<1x128xf32>
    %27 = vector.broadcast %24 : vector<1x128xf32> to vector<8x128xf32>
    %28 = arith.mulf %5, %27 : vector<8x128xf32>
    %29 = vector.broadcast %26 : vector<1x128xf32> to vector<8x128xf32>
    %30 = arith.addf %28, %29 : vector<8x128xf32>
    %cst_15 = arith.constant 0.000000e+00 : f32
    %31 = vector.broadcast %cst_15 : f32 to vector<8x128xf32>
    %32 = arith.maximumf %30, %31 : vector<8x128xf32>
    %c0_16 = arith.constant 0 : index
    %c0_17 = arith.constant 0 : index
    %33 = vector.load %arg5[%c0_16, %c0_17] : memref<128x128xf32, #tpu.memory_space<vmem>>, vector<128x128xf32>
    %cst_18 = arith.constant dense<0.000000e+00> : vector<8x128xf32>
    %34 = tpu.matmul %32, %33, %cst_18 {dimension_numbers = #tpu.dot_dimension_numbers<[1], [0], [0], [1], [0, 0, 1, 1], [], []>} : vector<8x128xf32>, vector<128x128xf32>, vector<8x128xf32> -> vector<8x128xf32>
    %c0_19 = arith.constant 0 : index
    %c0_20 = arith.constant 0 : index
    %35 = vector.load %arg6[%c0_19, %c0_20] : memref<1x128xf32, #tpu.memory_space<vmem>>, vector<1x128xf32>
    %36 = vector.broadcast %35 : vector<1x128xf32> to vector<8x128xf32>
    %37 = arith.addf %34, %36 : vector<8x128xf32>
    %c0_21 = arith.constant 0 : index
    %c0_22 = arith.constant 0 : index
    %38 = vector.load %arg7[%c0_21, %c0_22] : memref<1x128xf32, #tpu.memory_space<vmem>>, vector<1x128xf32>
    %c0_23 = arith.constant 0 : index
    %c0_24 = arith.constant 0 : index
    %39 = vector.load %arg8[%c0_23, %c0_24] : memref<1x128xf32, #tpu.memory_space<vmem>>, vector<1x128xf32>
    %cst_25 = arith.constant dense<0.000000e+00> : vector<128xf32>
    %40 = vector.multi_reduction <add>, %37, %cst_25 [0] : vector<8x128xf32> to vector<128xf32>
    %41 = vector.shape_cast %40 : vector<128xf32> to vector<1x128xf32>
    %cst_26 = arith.constant 1.250000e-01 : f32
    %42 = vector.broadcast %cst_26 : f32 to vector<1x128xf32>
    %43 = arith.mulf %41, %42 : vector<1x128xf32>
    %44 = arith.mulf %37, %37 : vector<8x128xf32>
    %cst_27 = arith.constant dense<0.000000e+00> : vector<128xf32>
    %45 = vector.multi_reduction <add>, %44, %cst_27 [0] : vector<8x128xf32> to vector<128xf32>
    %46 = vector.shape_cast %45 : vector<128xf32> to vector<1x128xf32>
    %cst_28 = arith.constant 1.250000e-01 : f32
    %47 = vector.broadcast %cst_28 : f32 to vector<1x128xf32>
    %48 = arith.mulf %46, %47 : vector<1x128xf32>
    %49 = arith.mulf %43, %43 : vector<1x128xf32>
    %50 = arith.subf %48, %49 : vector<1x128xf32>
    %cst_29 = arith.constant 0.000000e+00 : f32
    %51 = vector.broadcast %cst_29 : f32 to vector<1x128xf32>
    %52 = arith.maximumf %50, %51 : vector<1x128xf32>
    %cst_30 = arith.constant 9.99999974E-6 : f32
    %53 = vector.broadcast %cst_30 : f32 to vector<1x128xf32>
    %54 = arith.addf %52, %53 : vector<1x128xf32>
    %55 = math.rsqrt %54 : vector<1x128xf32>
    %56 = arith.mulf %38, %55 : vector<1x128xf32>
    %57 = arith.mulf %43, %56 : vector<1x128xf32>
    %58 = arith.subf %39, %57 : vector<1x128xf32>
    %59 = vector.broadcast %56 : vector<1x128xf32> to vector<8x128xf32>
    %60 = arith.mulf %37, %59 : vector<8x128xf32>
    %61 = vector.broadcast %58 : vector<1x128xf32> to vector<8x128xf32>
    %62 = arith.addf %60, %61 : vector<8x128xf32>
    %cst_31 = arith.constant 0.000000e+00 : f32
    %63 = vector.broadcast %cst_31 : f32 to vector<8x128xf32>
    %64 = arith.maximumf %62, %63 : vector<8x128xf32>
    %c0_32 = arith.constant 0 : index
    %c0_33 = arith.constant 0 : index
    %65 = vector.load %arg9[%c0_32, %c0_33] : memref<128x128xf32, #tpu.memory_space<vmem>>, vector<128x128xf32>
    %cst_34 = arith.constant dense<0.000000e+00> : vector<8x128xf32>
    %66 = tpu.matmul %64, %65, %cst_34 {dimension_numbers = #tpu.dot_dimension_numbers<[1], [0], [0], [1], [0, 0, 1, 1], [], []>} : vector<8x128xf32>, vector<128x128xf32>, vector<8x128xf32> -> vector<8x128xf32>
    %c0_35 = arith.constant 0 : index
    %c0_36 = arith.constant 0 : index
    %67 = vector.load %arg10[%c0_35, %c0_36] : memref<1x128xf32, #tpu.memory_space<vmem>>, vector<1x128xf32>
    %68 = vector.broadcast %67 : vector<1x128xf32> to vector<8x128xf32>
    %69 = arith.addf %66, %68 : vector<8x128xf32>
    %c0_37 = arith.constant 0 : index
    %c0_38 = arith.constant 0 : index
    %70 = vector.load %arg11[%c0_37, %c0_38] : memref<8x128xf32, #tpu.memory_space<vmem>>, vector<8x128xf32>
    tpu.vector_store %arg11[%c0_37, %c0_38], %69 {strides = array<i32>} : memref<8x128xf32, #tpu.memory_space<vmem>>, vector<8x128xf32>,
    return
  }
}

</mosaic_0001>

<llo_original>
// kernel: classifier_forward.1
$region0: #{classifier_forward.1}
  #allocation0 [shape = 'u32[]', space=smem, size = 0x4, offset = 0x4, fixed_abs, tag = 'smem constant byte address 0x4 - core index']
  #allocation1 [shape = 'u32[72,128]{1,0:T(1,128)}', space=vmem, size = 0x9000, scoped, tag = 'internal scratch']
  %s0 = inlined_call_operand.vmem [shape: f32[8,32], index: 0, kind: input, shape index: {}]
  %s1 = inlined_call_operand.hbm [shape: f32[32,128], index: 1, kind: input, shape index: {}]
  %s2 = inlined_call_operand.hbm [shape: f32[1,128], index: 2, kind: input, shape index: {}]
  %s3 = inlined_call_operand.vmem [shape: f32[1,128], index: 3, kind: input, shape index: {}]
  %s4 = inlined_call_operand.hbm [shape: f32[1,128], index: 4, kind: input, shape index: {}]
  %s5 = inlined_call_operand.hbm [shape: f32[128,128], index: 5, kind: input, shape index: {}]
  %s6 = inlined_call_operand.hbm [shape: f32[1,128], index: 6, kind: input, shape index: {}]
  %s7 = inlined_call_operand.hbm [shape: f32[1,128], index: 7, kind: input, shape index: {}]
  %s8 = inlined_call_operand.hbm [shape: f32[1,128], index: 8, kind: input, shape index: {}]
  %s9 = inlined_call_operand.hbm [shape: f32[128,128], index: 9, kind: input, shape index: {}]
  %s10 = inlined_call_operand.hbm [shape: f32[1,128], index: 10, kind: input, shape index: {}]
  %s11 = inlined_call_operand.hbm [shape: f32[8,128], index: 11, kind: output, shape index: {}]
  %s12 = sld [smem:[#allocation0]]
  $region90: #{classifier_forward.1} parent=0
    _
  %s14 = ssub.s32 1, %s12
  %s15 = scalar_select 0, %s14, %s12
  $region1: #{classifier_forward.1} parent=0
    #allocation2 [shape = 'u8[16384]{0}', space=vmem, size = 0x4000, scoped, tag = 'input window, operand 1, single buffered']
    #allocation3 [shape = 's32[1]{0}', space=sflag, size = 0x4, scoped, tag = 'scoped memory for classifier_forward.1']
    #allocation4 [shape = 's32[1]{0}', space=sflag, size = 0x4, scoped, tag = 'scoped memory for classifier_forward.1']
    #allocation5 [shape = 'u8[512]{0}', space=vmem, size = 0x400, scoped, tag = 'input window, operand 2, single buffered']
    #allocation6 [shape = 's32[1]{0}', space=sflag, size = 0x4, scoped, tag = 'scoped memory for classifier_forward.1']
    #allocation7 [shape = 'u8[512]{0}', space=vmem, size = 0x400, scoped, tag = 'input window, operand 4, single buffered']
    #allocation8 [shape = 'u8[65536]{0}', space=vmem, size = 0x10000, scoped, tag = 'input window, operand 5, single buffered']
    #allocation9 [shape = 's32[1]{0}', space=sflag, size = 0x4, scoped, tag = 'scoped memory for classifier_forward.1']
    #allocation10 [shape = 'u8[512]{0}', space=vmem, size = 0x400, scoped, tag = 'input window, operand 6, single buffered']
    #allocation11 [shape = 'u8[512]{0}', space=vmem, size = 0x400, scoped, tag = 'input window, operand 7, single buffered']
    #allocation12 [shape = 's32[1]{0}', space=sflag, size = 0x4, scoped, tag = 'scoped memory for classifier_forward.1']
    #allocation13 [shape = 'u8[512]{0}', space=vmem, size = 0x400, scoped, tag = 'input window, operand 8, single buffered']
    #allocation14 [shape = 'u8[65536]{0}', space=vmem, size = 0x10000, scoped, tag = 'input window, operand 9, single buffered']
    #allocation15 [shape = 's32[1]{0}', space=sflag, size = 0x4, scoped, tag = 'scoped memory for classifier_forward.1']
    #allocation16 [shape = 'u8[512]{0}', space=vmem, size = 0x400, scoped, tag = 'input window, operand 10, single buffered']
    #allocation17 [shape = 'u8[4096]{0}', space=vmem, size = 0x1000, scoped, tag = 'output window, operand 0, single buffered']
    %16 = vsyncpa [#allocation3], 0
    %17 = vsyncpa [#allocation6], 0
    %18 = vsyncpa [#allocation9], 0
    %19 = vsyncpa [#allocation12], 0
    %20 = vsyncpa [#allocation15], 0
    %21 = vsyncpa [#allocation4], 0
    // Predicated region
    $region2: #{classifier_forward.1} parent=1 // pred_check
      _
    $region3: #{classifier_forward.1} parent=1 // pred_check_branch
      %23 = sbr.rel (0) target = $region5
    $region4: #{classifier_forward.1} parent=1 // pred_region
      _
    $region5: #{classifier_forward.1} parent=1 // pred_fallthru
      _
    // Predicated region
    $region6: #{classifier_forward.1} parent=1 // pred_check
      _
    $region7: #{classifier_forward.1} parent=1 // pred_check_branch
      %25 = sbr.rel (0) target = $region9
    $region8: #{classifier_forward.1} parent=1 // pred_region
      %27 = vsyncadd [#allocation3], 0
      %s28 = sshll.u32 %s1, 4
      %s29 = int_to_ptr.hbm [resolvable:$true] %s28
      %s30 = sshll.u32 [#allocation2], 4
      %s31 = int_to_ptr.vmem [resolvable:$true] %s30
      %36 = dma.hbm_to_vmem [thread:$0]  %s29, 512, %s31, [#allocation3], 128, 128, 8
    $region9: #{classifier_forward.1} parent=1 // pred_fallthru
      _
    // Predicated region
    $region10: #{classifier_forward.1} parent=1 // pred_check
      _
    $region11: #{classifier_forward.1} parent=1 // pred_check_branch
      %38 = sbr.rel (0) target = $region13
    $region12: #{classifier_forward.1} parent=1 // pred_region
      %40 = vsyncadd [#allocation6], 0
      %s42 = sshll.u32 %s2, 4
      %s43 = int_to_ptr.hbm [resolvable:$true] %s42
      %s44 = sshll.u32 [#allocation5], 4
      %s45 = int_to_ptr.vmem [resolvable:$true] %s44
      %47 = dma.hbm_to_vmem [thread:$0]  %s43, 16, %s45, [#allocation6]
    $region13: #{classifier_forward.1} parent=1 // pred_fallthru
      _
    // Predicated region
    $region14: #{classifier_forward.1} parent=1 // pred_check
      _
    $region15: #{classifier_forward.1} parent=1 // pred_check_branch
      %49 = sbr.rel (0) target = $region17
    $region16: #{classifier_forward.1} parent=1 // pred_region
      _
    $region17: #{classifier_forward.1} parent=1 // pred_fallthru
      _
    // Predicated region
    $region18: #{classifier_forward.1} parent=1 // pred_check
      _
    $region19: #{classifier_forward.1} parent=1 // pred_check_branch
      %51 = sbr.rel (0) target = $region21
    $region20: #{classifier_forward.1} parent=1 // pred_region
      %53 = vsyncadd [#allocation6], 0
      %s55 = sshll.u32 %s4, 4
      %s56 = int_to_ptr.hbm [resolvable:$true] %s55
      %s57 = sshll.u32 [#allocation7], 4
      %s58 = int_to_ptr.vmem [resolvable:$true] %s57
      %60 = dma.hbm_to_vmem [thread:$0]  %s56, 16, %s58, [#allocation6]
    $region21: #{classifier_forward.1} parent=1 // pred_fallthru
      _
    // Predicated region
    $region22: #{classifier_forward.1} parent=1 // pred_check
      _
    $region23: #{classifier_forward.1} parent=1 // pred_check_branch
      %62 = sbr.rel (0) target = $region25
    $region24: #{classifier_forward.1} parent=1 // pred_region
      %64 = vsyncadd [#allocation9], 0
      %s65 = sshll.u32 %s5, 4
      %s66 = int_to_ptr.hbm [resolvable:$true] %s65
      %s67 = sshll.u32 [#allocation8], 4
      %s68 = int_to_ptr.vmem [resolvable:$true] %s67
      %73 = dma.hbm_to_vmem [thread:$0]  %s66, 2048, %s68, [#allocation9], 128, 128, 8
    $region25: #{classifier_forward.1} parent=1 // pred_fallthru
      _
    // Predicated region
    $region26: #{classifier_forward.1} parent=1 // pred_check
      _
    $region27: #{classifier_forward.1} parent=1 // pred_check_branch
      %75 = sbr.rel (0) target = $region29
    $region28: #{classifier_forward.1} parent=1 // pred_region
      %77 = vsyncadd [#allocation9], 0
      %s79 = sshll.u32 %s6, 4
      %s80 = int_to_ptr.hbm [resolvable:$true] %s79
      %s81 = sshll.u32 [#allocation10], 4
      %s82 = int_to_ptr.vmem [resolvable:$true] %s81
      %84 = dma.hbm_to_vmem [thread:$0]  %s80, 16, %s82, [#allocation9]
    $region29: #{classifier_forward.1} parent=1 // pred_fallthru
      _
    // Predicated region
    $region30: #{classifier_forward.1} parent=1 // pred_check
      _
    $region31: #{classifier_forward.1} parent=1 // pred_check_branch
      %86 = sbr.rel (0) target = $region33
    $region32: #{classifier_forward.1} parent=1 // pred_region
      %88 = vsyncadd [#allocation12], 0
      %s90 = sshll.u32 %s7, 4
      %s91 = int_to_ptr.hbm [resolvable:$true] %s90
      %s92 = sshll.u32 [#allocation11], 4
      %s93 = int_to_ptr.vmem [resolvable:$true] %s92
      %95 = dma.hbm_to_vmem [thread:$0]  %s91, 16, %s93, [#allocation12]
    $region33: #{classifier_forward.1} parent=1 // pred_fallthru
      _
    // Predicated region
    $region34: #{classifier_forward.1} parent=1 // pred_check
      _
    $region35: #{classifier_forward.1} parent=1 // pred_check_branch
      %97 = sbr.rel (0) target = $region37
    $region36: #{classifier_forward.1} parent=1 // pred_region
      %99 = vsyncadd [#allocation12], 0
      %s101 = sshll.u32 %s8, 4
      %s102 = int_to_ptr.hbm [resolvable:$true] %s101
      %s103 = sshll.u32 [#allocation13], 4
      %s104 = int_to_ptr.vmem [resolvable:$true] %s103
      %106 = dma.hbm_to_vmem [thread:$0]  %s102, 16, %s104, [#allocation12]
    $region37: #{classifier_forward.1} parent=1 // pred_fallthru
      _
    // Predicated region
    $region38: #{classifier_forward.1} parent=1 // pred_check
      _
    $region39: #{classifier_forward.1} parent=1 // pred_check_branch
      %108 = sbr.rel (0) target = $region41
    $region40: #{classifier_forward.1} parent=1 // pred_region
      %110 = vsyncadd [#allocation15], 0
      %s111 = sshll.u32 %s9, 4
      %s112 = int_to_ptr.hbm [resolvable:$true] %s111
      %s113 = sshll.u32 [#allocation14], 4
      %s114 = int_to_ptr.vmem [resolvable:$true] %s113
      %119 = dma.hbm_to_vmem [thread:$0]  %s112, 2048, %s114, [#allocation15], 128, 128, 8
    $region41: #{classifier_forward.1} parent=1 // pred_fallthru
      _
    // Predicated region
    $region42: #{classifier_forward.1} parent=1 // pred_check
      _
    $region43: #{classifier_forward.1} parent=1 // pred_check_branch
      %121 = sbr.rel (0) target = $region45
    $region44: #{classifier_forward.1} parent=1 // pred_region
      %123 = vsyncadd [#allocation15], 0
      %s125 = sshll.u32 %s10, 4
      %s126 = int_to_ptr.hbm [resolvable:$true] %s125
      %s127 = sshll.u32 [#allocation16], 4
      %s128 = int_to_ptr.vmem [resolvable:$true] %s127
      %130 = dma.hbm_to_vmem [thread:$0]  %s126, 16, %s128, [#allocation15]
    $region45: #{classifier_forward.1} parent=1 // pred_fallthru
      _
    // Predicated region
    $region46: #{classifier_forward.1} parent=1 // pred_check
      _
    $region47: #{classifier_forward.1} parent=1 // pred_check_branch
      %132 = sbr.rel (0) target = $region49
    $region48: #{classifier_forward.1} parent=1 // pred_region
      %134 = dma.done [#allocation3], 512
    $region49: #{classifier_forward.1} parent=1 // pred_fallthru
      _
    // Predicated region
    $region50: #{classifier_forward.1} parent=1 // pred_check
      _
    $region51: #{classifier_forward.1} parent=1 // pred_check_branch
      %136 = sbr.rel (0) target = $region53
    $region52: #{classifier_forward.1} parent=1 // pred_region
      %138 = dma.done [#allocation6], 16
    $region53: #{classifier_forward.1} parent=1 // pred_fallthru
      _
    // Predicated region
    $region54: #{classifier_forward.1} parent=1 // pred_check
      _
    $region55: #{classifier_forward.1} parent=1 // pred_check_branch
      %140 = sbr.rel (0) target = $region57
    $region56: #{classifier_forward.1} parent=1 // pred_region
      %142 = dma.done [#allocation6], 16
    $region57: #{classifier_forward.1} parent=1 // pred_fallthru
      _
    // Predicated region
    $region58: #{classifier_forward.1} parent=1 // pred_check
      _
    $region59: #{classifier_forward.1} parent=1 // pred_check_branch
      %144 = sbr.rel (0) target = $region61
    $region60: #{classifier_forward.1} parent=1 // pred_region
      %146 = dma.done [#allocation9], 2048
    $region61: #{classifier_forward.1} parent=1 // pred_fallthru
      _
    // Predicated region
    $region62: #{classifier_forward.1} parent=1 // pred_check
      _
    $region63: #{classifier_forward.1} parent=1 // pred_check_branch
      %148 = sbr.rel (0) target = $region65
    $region64: #{classifier_forward.1} parent=1 // pred_region
      %150 = dma.done [#allocation9], 16
    $region65: #{classifier_forward.1} parent=1 // pred_fallthru
      _
    // Predicated region
    $region66: #{classifier_forward.1} parent=1 // pred_check
      _
    $region67: #{classifier_forward.1} parent=1 // pred_check_branch
      %152 = sbr.rel (0) target = $region69
    $region68: #{classifier_forward.1} parent=1 // pred_region
      %154 = dma.done [#allocation12], 16
    $region69: #{classifier_forward.1} parent=1 // pred_fallthru
      _
    // Predicated region
    $region70: #{classifier_forward.1} parent=1 // pred_check
      _
    $region71: #{classifier_forward.1} parent=1 // pred_check_branch
      %156 = sbr.rel (0) target = $region73
    $region72: #{classifier_forward.1} parent=1 // pred_region
      %158 = dma.done [#allocation12], 16
    $region73: #{classifier_forward.1} parent=1 // pred_fallthru
      _
    // Predicated region
    $region74: #{classifier_forward.1} parent=1 // pred_check
      _
    $region75: #{classifier_forward.1} parent=1 // pred_check_branch
      %160 = sbr.rel (0) target = $region77
    $region76: #{classifier_forward.1} parent=1 // pred_region
      %162 = dma.done [#allocation15], 2048
    $region77: #{classifier_forward.1} parent=1 // pred_fallthru
      _
    // Predicated region
    $region78: #{classifier_forward.1} parent=1 // pred_check
      _
    $region79: #{classifier_forward.1} parent=1 // pred_check_branch
      %164 = sbr.rel (0) target = $region81
    $region80: #{classifier_forward.1} parent=1 // pred_region
      %166 = dma.done [#allocation15], 16
    $region81: #{classifier_forward.1} parent=1 // pred_fallthru
      _
    %v167 = vld [vmem:[%s0] sm:$0xff]
    %v168 = vld [vmem:[#allocation2] sm:$0xff]
    %v169 = vld [vmem:[#allocation2 + $0x8] sm:$0xff]
    %v170 = vld [vmem:[#allocation2 + $0x10] sm:$0xff]
    %v171 = vld [vmem:[#allocation2 + $0x18] sm:$0xff]
    %v172 = vld [vmem:[#allocation5] sm:$0x1]
    %v174 = vperm.slane %v172, 0
    %vm176 = vcmask 261120
    %v178 = vsel %vm176, %v167, 0
    %180 = vmatpush.msra.mxu0 0.0
    %181 = vmatpush.msra.mxu0 0.0
    %182 = vmatpush.msra.mxu0 0.0
    %183 = vmatpush.msra.mxu0 0.0
    %184 = vmatpush.msra.mxu0 0.0
    %185 = vmatpush.msra.mxu0 0.0
    %186 = vmatpush.msra.mxu0 0.0
    %187 = vmatpush.msra.mxu0 0.0
    %188 = vmatpush.msra.mxu0 0.0
    %189 = vmatpush.msra.mxu0 0.0
    %190 = vmatpush.msra.mxu0 0.0
    %191 = vmatpush.msra.mxu0 0.0
    %192 = vmatpush.msra.mxu0 %v171
    %193 = vmatpush.msra.mxu0 %v170
    %194 = vmatpush.msra.mxu0 %v169
    %195 = vmatpush.msra.mxu0 %v168
    %196 = vmatmul.f32.gmra.mxu0 %v178
    %v197 = vpop.f32.mrf.mxu0
    %v198 = vadd.f32 %v174, %v197
    %199 = vdwg.mxu0
    %v200 = vld [vmem:[%s3] sm:$0x1]
    %v201 = vld [vmem:[#allocation7] sm:$0x1]
    %v202 = vrot.slane %v198, 4
    %v203 = vadd.f32 %v198, %v202
    %v204 = vrot.slane %v203, 2
    %v205 = vadd.f32 %v203, %v204
    %v206 = vrot.slane %v205, 1
    %v207 = vadd.f32 %v205, %v206
    %v208 = vmul.f32 %v207, 0.125
    %v209 = vmul.f32 %v198, %v198
    %v210 = vrot.slane %v209, 4
    %v211 = vadd.f32 %v209, %v210
    %v212 = vrot.slane %v211, 2
    %v213 = vadd.f32 %v211, %v212
    %v214 = vrot.slane %v213, 1
    %v215 = vadd.f32 %v213, %v214
    %v216 = vmul.f32 %v215, 0.125
    %v217 = vmul.f32 %v208, %v208
    %v218 = vsub.f32 %v216, %v217
    %v219 = vmax.f32 %v218, 0.0
    %v220 = vadd.f32 %v219, 1e-05
    %v221 = vrsqrt.pop %v220
    %v222 = vmul.f32 %v221, %v220
    %v223 = vmul.f32 %v222, %v221
    %v224 = vmul.f32 0.5, %v223
    %v225 = vsub.f32 1.5, %v224
    %v226 = vmul.f32 %v221, %v225
    %vm227 = vweird.f32 %v220
    %vm228 = vweird.f32 %v221
    %vm229 = vmor %vm227, %vm228
    %v230 = vsel %vm229, %v221, %v226
    %v231 = vmul.f32 %v200, %v230
    %v232 = vmul.f32 %v208, %v231
    %v233 = vsub.f32 %v201, %v232
    %v235 = vperm.slane %v231, 0
    %v237 = vmul.f32 %v198, %v235
    %v239 = vperm.slane %v233, 0
    %v241 = vadd.f32 %v237, %v239
    %v242 = vmax.f32 %v241, 0.0
    %v243 = vld [vmem:[#allocation8] sm:$0xff]
    %v244 = vld [vmem:[#allocation8 + $0x8] sm:$0xff]
    %v245 = vld [vmem:[#allocation8 + $0x10] sm:$0xff]
    %v246 = vld [vmem:[#allocation8 + $0x18] sm:$0xff]
    %v247 = vld [vmem:[#allocation8 + $0x20] sm:$0xff]
    %v248 = vld [vmem:[#allocation8 + $0x28] sm:$0xff]
    %v249 = vld [vmem:[#allocation8 + $0x30] sm:$0xff]
    %v250 = vld [vmem:[#allocation8 + $0x38] sm:$0xff]
    %v251 = vld [vmem:[#allocation8 + $0x40] sm:$0xff]
    %v252 = vld [vmem:[#allocation8 + $0x48] sm:$0xff]
    %v253 = vld [vmem:[#allocation8 + $0x50] sm:$0xff]
    %v254 = vld [vmem:[#allocation8 + $0x58] sm:$0xff]
    %v255 = vld [vmem:[#allocation8 + $0x60] sm:$0xff]
    %v256 = vld [vmem:[#allocation8 + $0x68] sm:$0xff]
    %v257 = vld [vmem:[#allocation8 + $0x70] sm:$0xff]
    %v258 = vld [vmem:[#allocation8 + $0x78] sm:$0xff]
    %v259 = vld [vmem:[#allocation10] sm:$0x1]
    %v261 = vperm.slane %v259, 0
    %263 = vmatpush.msra.mxu0 %v258
    %264 = vmatpush.msra.mxu0 %v257
    %265 = vmatpush.msra.mxu0 %v256
    %266 = vmatpush.msra.mxu0 %v255
    %267 = vmatpush.msra.mxu0 %v254
    %268 = vmatpush.msra.mxu0 %v253
    %269 = vmatpush.msra.mxu0 %v252
    %270 = vmatpush.msra.mxu0 %v251
    %271 = vmatpush.msra.mxu0 %v250
    %272 = vmatpush.msra.mxu0 %v249
    %273 = vmatpush.msra.mxu0 %v248
    %274 = vmatpush.msra.mxu0 %v247
    %275 = vmatpush.msra.mxu0 %v246
    %276 = vmatpush.msra.mxu0 %v245
    %277 = vmatpush.msra.mxu0 %v244
    %278 = vmatpush.msra.mxu0 %v243
    %279 = vmatmul.f32.gmra.mxu0 %v242
    %v280 = vpop.f32.mrf.mxu0
    %v281 = vadd.f32 %v261, %v280
    %282 = vdwg.mxu0
    %v283 = vld [vmem:[#allocation11] sm:$0x1]
    %v284 = vld [vmem:[#allocation13] sm:$0x1]
    %v285 = vrot.slane %v281, 4
    %v286 = vadd.f32 %v281, %v285
    %v287 = vrot.slane %v286, 2
    %v288 = vadd.f32 %v286, %v287
    %v289 = vrot.slane %v288, 1
    %v290 = vadd.f32 %v288, %v289
    %v291 = vmul.f32 %v290, 0.125
    %v292 = vmul.f32 %v281, %v281
    %v293 = vrot.slane %v292, 4
    %v294 = vadd.f32 %v292, %v293
    %v295 = vrot.slane %v294, 2
    %v296 = vadd.f32 %v294, %v295
    %v297 = vrot.slane %v296, 1
    %v298 = vadd.f32 %v296, %v297
    %v299 = vmul.f32 %v298, 0.125
    %v300 = vmul.f32 %v291, %v291
    %v301 = vsub.f32 %v299, %v300
    %v302 = vmax.f32 %v301, 0.0
    %v303 = vadd.f32 %v302, 1e-05
    %v304 = vrsqrt.pop %v303
    %v305 = vmul.f32 %v304, %v303
    %v306 = vmul.f32 %v305, %v304
    %v307 = vmul.f32 0.5, %v306
    %v308 = vsub.f32 1.5, %v307
    %v309 = vmul.f32 %v304, %v308
    %vm310 = vweird.f32 %v303
    %vm311 = vweird.f32 %v304
    %vm312 = vmor %vm310, %vm311
    %v313 = vsel %vm312, %v304, %v309
    %v314 = vmul.f32 %v283, %v313
    %v315 = vmul.f32 %v291, %v314
    %v316 = vsub.f32 %v284, %v315
    %v318 = vperm.slane %v314, 0
    %v320 = vmul.f32 %v281, %v318
    %v322 = vperm.slane %v316, 0
    %v324 = vadd.f32 %v320, %v322
    %v325 = vmax.f32 %v324, 0.0
    %v326 = vld [vmem:[#allocation14] sm:$0xff]
    %v327 = vld [vmem:[#allocation14 + $0x8] sm:$0xff]
    %v328 = vld [vmem:[#allocation14 + $0x10] sm:$0xff]
    %v329 = vld [vmem:[#allocation14 + $0x18] sm:$0xff]
    %v330 = vld [vmem:[#allocation14 + $0x20] sm:$0xff]
    %v331 = vld [vmem:[#allocation14 + $0x28] sm:$0xff]
    %v332 = vld [vmem:[#allocation14 + $0x30] sm:$0xff]
    %v333 = vld [vmem:[#allocation14 + $0x38] sm:$0xff]
    %v334 = vld [vmem:[#allocation14 + $0x40] sm:$0xff]
    %v335 = vld [vmem:[#allocation14 + $0x48] sm:$0xff]
    %v336 = vld [vmem:[#allocation14 + $0x50] sm:$0xff]
    %v337 = vld [vmem:[#allocation14 + $0x58] sm:$0xff]
    %v338 = vld [vmem:[#allocation14 + $0x60] sm:$0xff]
    %v339 = vld [vmem:[#allocation14 + $0x68] sm:$0xff]
    %v340 = vld [vmem:[#allocation14 + $0x70] sm:$0xff]
    %v341 = vld [vmem:[#allocation14 + $0x78] sm:$0xff]
    %v342 = vld [vmem:[#allocation16] sm:$0x1]
    %v344 = vperm.slane %v342, 0
    %346 = vmatpush.msra.mxu0 %v341
    %347 = vmatpush.msra.mxu0 %v340
    %348 = vmatpush.msra.mxu0 %v339
    %349 = vmatpush.msra.mxu0 %v338
    %350 = vmatpush.msra.mxu0 %v337
    %351 = vmatpush.msra.mxu0 %v336
    %352 = vmatpush.msra.mxu0 %v335
    %353 = vmatpush.msra.mxu0 %v334
    %354 = vmatpush.msra.mxu0 %v333
    %355 = vmatpush.msra.mxu0 %v332
    %356 = vmatpush.msra.mxu0 %v331
    %357 = vmatpush.msra.mxu0 %v330
    %358 = vmatpush.msra.mxu0 %v329
    %359 = vmatpush.msra.mxu0 %v328
    %360 = vmatpush.msra.mxu0 %v327
    %361 = vmatpush.msra.mxu0 %v326
    %362 = vmatmul.f32.gmra.mxu0 %v325
    %v363 = vpop.f32.mrf.mxu0
    %v364 = vadd.f32 %v344, %v363
    %365 = vdwg.mxu0
    %366 = vst [vmem:[#allocation17] sm:$0xff] %v364
    // Predicated region
    $region82: #{classifier_forward.1} parent=1 // pred_check
      _
    $region83: #{classifier_forward.1} parent=1 // pred_check_branch
      %368 = sbr.rel (0) target = $region85
    $region84: #{classifier_forward.1} parent=1 // pred_region
      %370 = vsyncadd [#allocation4], 0
      %s372 = sshll.u32 [#allocation17], 4
      %s373 = int_to_ptr.vmem [resolvable:$true] %s372
      %s374 = sshll.u32 %s11, 4
      %s375 = int_to_ptr.hbm [resolvable:$true] %s374
      %377 = dma.vmem_to_hbm [thread:$0]  %s373, 128, %s375, [#allocation4]
    $region85: #{classifier_forward.1} parent=1 // pred_fallthru
      _
    // Predicated region
    $region86: #{classifier_forward.1} parent=1 // pred_check
      _
    $region87: #{classifier_forward.1} parent=1 // pred_check_branch
      %379 = sbr.rel (0) target = $region89
    $region88: #{classifier_forward.1} parent=1 // pred_region
      %381 = dma.done [#allocation4], 128
    $region89: #{classifier_forward.1} parent=1 // pred_fallthru
      _
    %382 = vsyncpa [#allocation3], 1
    %383 = vsyncpa [#allocation6], 1
    %384 = vsyncpa [#allocation9], 1
    %385 = vsyncpa [#allocation12], 1
    %386 = vsyncpa [#allocation15], 1
    %387 = vsyncpa [#allocation4], 1

</llo_original>
